<compile_context>
chip_gen: v6e
topology: v6e:2x2x1
jax: 0.10.0
libtpu: 0.0.40
codegen_flags: <defaults>
</compile_context>

<pallas_src>
import functools

import jax
import jax.numpy as jnp
from jax.experimental import pallas as pl
from jax.experimental.pallas import tpu as pltpu


# ---------------------------------------------------------------------------
# Hardware-derived configuration
# ---------------------------------------------------------------------------

try:
    _VMEM_CAP = int(pltpu.get_tpu_info().vmem_capacity_bytes)
except Exception:  # pragma: no cover - conservative fallback
    _VMEM_CAP = 64 * 1024 * 1024

_LARGE_VMEM = _VMEM_CAP >= 100 * 1024 * 1024          # v5e / v6e (128 MiB)
_VMEM_LIMIT = min((_VMEM_CAP * 3) // 4, 48 * 1024 * 1024)
# Larger tiles on big-VMEM chips (fewer HBM re-reads), smaller on v7x (64 MiB).
_TM, _TN, _TK = (512, 512, 1024) if _LARGE_VMEM else (256, 256, 512)


def _round_up(n, m):
    return (n + m - 1) // m * m


def _pad_to(a, shape):
    pads = [(0, s - d) for d, s in zip(a.shape, shape)]
    if not any(p for _, p in pads):
        return a
    return jnp.pad(a, pads)


def _pick_tile(dim, target, align):
    """Largest multiple of `align` <= target that evenly divides dim, else full dim."""
    t = min(target, dim)
    t -= t % align
    while t >= align:
        if dim % t == 0:
            return t
        t -= align
    return dim


def _row_tile(m, target):
    """Row tile; halves once if a single block would leave the 2nd TC idle (v7x)."""
    tm = _pick_tile(m, target, 16)
    if m // tm < 2:
        half = _pick_tile(m, max(tm // 2, 16), 16)
        if m // half >= 2:
            tm = half
    return tm


# ---------------------------------------------------------------------------
# Kernels (bf16 MXU inputs, f32 accumulation / statistics)
# ---------------------------------------------------------------------------

def _matmul_kernel(x_ref, w_ref, o_ref, acc_ref):
    # (tm, tk) @ (tk, tn), K-accumulated; no bias (q/k/v projections, bias=False).
    @pl.when(pl.program_id(2) == 0)
    def _():
        acc_ref[...] = jnp.zeros_like(acc_ref)

    acc_ref[...] += jnp.dot(x_ref[...], w_ref[...], preferred_element_type=jnp.float32)

    @pl.when(pl.program_id(2) == pl.num_programs(2) - 1)
    def _():
        o_ref[...] = acc_ref[...].astype(o_ref.dtype)


def _layernorm(z, g, be, n_valid):
    """LayerNorm over the last dim; statistics restricted to the first n_valid lanes."""
    n = z.shape[-1]
    if n_valid == n:
        mu = jnp.mean(z, axis=-1, keepdims=True)
        d = z - mu
        var = jnp.mean(d * d, axis=-1, keepdims=True)
    else:
        lane = jax.lax.broadcasted_iota(jnp.int32, z.shape, z.ndim - 1)
        mask = lane < n_valid
        inv_n = 1.0 / float(n_valid)
        mu = jnp.sum(jnp.where(mask, z, 0.0), axis=-1, keepdims=True) * inv_n
        d = jnp.where(mask, z - mu, 0.0)
        var = jnp.sum(d * d, axis=-1, keepdims=True) * inv_n
    zn = (z - mu) * jax.lax.rsqrt(var + 1e-5)       # eps + biased var (PyTorch)
    return zn * g + be                               # padded lanes: g = be = 0 -> 0


def _linear_add_ln_kernel(x_ref, w_ref, b_ref, res_ref, g_ref, be_ref, o_ref,
                          acc_ref, *, n_valid):
    # Fused:  LayerNorm( residual + (x @ W + b) )   (full N per tile).
    @pl.when(pl.program_id(1) == 0)
    def _():
        acc_ref[...] = jnp.zeros_like(acc_ref)

    acc_ref[...] += jnp.dot(x_ref[...], w_ref[...], preferred_element_type=jnp.float32)

    @pl.when(pl.program_id(1) == pl.num_programs(1) - 1)
    def _():
        z = acc_ref[...] + b_ref[...] + res_ref[...].astype(jnp.float32)
        o_ref[...] = _layernorm(z, g_ref[...], be_ref[...], n_valid).astype(o_ref.dtype)


def _ffn_kernel(x_ref, w1_ref, b1_ref, w2_ref, b2_ref, res_ref, g_ref, be_ref,
                o_ref, acc_ref, *, n_valid):
    # Fused FFN:  LN2( res + ReLU(x @ W1 + b1) @ W2 + b2 ), tiled over the hidden dim,
    # so the (M, 4C) hidden activation stays in VMEM (never round-trips HBM).
    @pl.when(pl.program_id(1) == 0)
    def _():
        acc_ref[...] = jnp.zeros_like(acc_ref)

    h = jnp.dot(x_ref[...], w1_ref[...], preferred_element_type=jnp.float32)
    h = jnp.maximum(h + b1_ref[...], 0.0).astype(x_ref.dtype)
    acc_ref[...] += jnp.dot(h, w2_ref[...], preferred_element_type=jnp.float32)

    @pl.when(pl.program_id(1) == pl.num_programs(1) - 1)
    def _():
        z = acc_ref[...] + b2_ref[...] + res_ref[...].astype(jnp.float32)
        o_ref[...] = _layernorm(z, g_ref[...], be_ref[...], n_valid).astype(o_ref.dtype)


def _attention_kernel(q_ref, k_ref, v_ref, o_ref, *, H, hs_p, scale):
    # All H heads for one batch element in a single grid step; q/k/v refs are the
    # contiguous (T, H*hs_p) slices of the fused QKV slab.
    T = q_ref.shape[0]
    row = jax.lax.broadcasted_iota(jnp.int32, (T, T), 0)
    col = jax.lax.broadcasted_iota(jnp.int32, (T, T), 1)
    causal = col <= row
    for h in range(H):                       # static unroll over heads
        sl = slice(h * hs_p, (h + 1) * hs_p)
        q = q_ref[:, sl] * scale             # scale on q: T*hs work, not T*T
        k = k_ref[:, sl]
        v = v_ref[:, sl]
        # q @ k^T without an explicit transpose: contract last dims directly.
        s = jax.lax.dot_general(q, k, (((1,), (1,)), ((), ())),
                                preferred_element_type=jnp.float32)
        s = jnp.where(causal, s, -jnp.inf)
        m = jnp.max(s, axis=-1, keepdims=True)
        e = jnp.exp(s - m)
        p = e * pl.reciprocal(jnp.sum(e, axis=-1, keepdims=True), approx=True)
        o_ref[:, sl] = jnp.dot(p.astype(v.dtype), v,
                               preferred_element_type=jnp.float32).astype(o_ref.dtype)


# ---------------------------------------------------------------------------
# pallas_call wrappers
# ---------------------------------------------------------------------------

def matmul(x, w):
    M, K = x.shape
    N = w.shape[1]
    tm = _row_tile(M, _TM)
    tn = _pick_tile(N, _TN, 128)
    tk = _pick_tile(K, _TK, 128)
    return pl.pallas_call(
        _matmul_kernel,
        out_shape=jax.ShapeDtypeStruct((M, N), jnp.bfloat16),
        grid=(M // tm, N // tn, K // tk),
        in_specs=[pl.BlockSpec((tm, tk), lambda i, j, k: (i, k)),
                  pl.BlockSpec((tk, tn), lambda i, j, k: (k, j))],
        out_specs=pl.BlockSpec((tm, tn), lambda i, j, k: (i, j)),
        scratch_shapes=[pltpu.VMEM((tm, tn), jnp.float32)],
        compiler_params=pltpu.CompilerParams(
            dimension_semantics=("parallel", "parallel", "arbitrary"),
            vmem_limit_bytes=_VMEM_LIMIT),
        cost_estimate=pl.CostEstimate(
            flops=2 * M * N * K, transcendentals=0,
            bytes_accessed=2 * (M * K + K * N + M * N)),
    )(x, w)


def linear_add_layernorm(x, w, b, res, g, be, *, n_valid):
    # out = LayerNorm(res + x @ w + b) * g + be ; full N (=Ce) per tile so row
    # statistics are computed in-register in the epilogue.
    M, K = x.shape
    N = w.shape[1]
    tm = _row_tile(M, _TM)
    tk = _pick_tile(K, _TK, 128)
    return pl.pallas_call(
        functools.partial(_linear_add_ln_kernel, n_valid=n_valid),
        out_shape=jax.ShapeDtypeStruct((M, N), jnp.bfloat16),
        grid=(M // tm, K // tk),
        in_specs=[pl.BlockSpec((tm, tk), lambda i, k: (i, k)),
                  pl.BlockSpec((tk, N), lambda i, k: (k, 0)),
                  pl.BlockSpec((1, N), lambda i, k: (0, 0)),
                  pl.BlockSpec((tm, N), lambda i, k: (i, 0)),
                  pl.BlockSpec((1, N), lambda i, k: (0, 0)),
                  pl.BlockSpec((1, N), lambda i, k: (0, 0))],
        out_specs=pl.BlockSpec((tm, N), lambda i, k: (i, 0)),
        scratch_shapes=[pltpu.VMEM((tm, N), jnp.float32)],
        compiler_params=pltpu.CompilerParams(
            dimension_semantics=("parallel", "arbitrary"),
            vmem_limit_bytes=_VMEM_LIMIT),
        cost_estimate=pl.CostEstimate(
            flops=2 * M * N * K, transcendentals=0,
            bytes_accessed=2 * (M * K + K * N + 3 * M * N)),
    )(x, w, b, res, g, be)


def ffn_add_layernorm(x, w1, b1, w2, b2, res, g, be, *, n_valid):
    # out = LayerNorm(res + ReLU(x @ W1 + b1) @ W2 + b2); the hidden dim is tiled
    # inside the grid so the intermediate never goes to HBM.
    M, K = x.shape
    Hid = w1.shape[1]
    N = w2.shape[1]
    tm = _row_tile(M, _TM)
    th = _pick_tile(Hid, _TK, 128)
    return pl.pallas_call(
        functools.partial(_ffn_kernel, n_valid=n_valid),
        out_shape=jax.ShapeDtypeStruct((M, N), jnp.bfloat16),
        grid=(M // tm, Hid // th),
        in_specs=[pl.BlockSpec((tm, K), lambda i, h: (i, 0)),
                  pl.BlockSpec((K, th), lambda i, h: (0, h)),
                  pl.BlockSpec((1, th), lambda i, h: (0, h)),
                  pl.BlockSpec((th, N), lambda i, h: (h, 0)),
                  pl.BlockSpec((1, N), lambda i, h: (0, 0)),
                  pl.BlockSpec((tm, N), lambda i, h: (i, 0)),
                  pl.BlockSpec((1, N), lambda i, h: (0, 0)),
                  pl.BlockSpec((1, N), lambda i, h: (0, 0))],
        out_specs=pl.BlockSpec((tm, N), lambda i, h: (i, 0)),
        scratch_shapes=[pltpu.VMEM((tm, N), jnp.float32)],
        compiler_params=pltpu.CompilerParams(
            dimension_semantics=("parallel", "arbitrary"),
            vmem_limit_bytes=_VMEM_LIMIT),
        cost_estimate=pl.CostEstimate(
            flops=2 * M * Hid * (K + N), transcendentals=0,
            bytes_accessed=2 * (M * K + K * Hid + Hid * N + 3 * M * N)),
    )(x, w1, b1, w2, b2, res, g, be)


def attention(qkv, B, T, H, hs, hs_p):
    # qkv: (B, T, 3*Ca) with layout [q_0..q_{H-1} | k_0.. | v_0..], hs_p lanes/head.
    # One grid step per batch element; all heads fused; contiguous lane-dense DMAs.
    Ca = H * hs_p
    scale = float(hs) ** -0.5
    return pl.pallas_call(
        functools.partial(_attention_kernel, H=H, hs_p=hs_p, scale=scale),
        out_shape=jax.ShapeDtypeStruct((B, T, Ca), jnp.bfloat16),
        grid=(B,),
        in_specs=[pl.BlockSpec((None, T, Ca), lambda b: (b, 0, 0)),
                  pl.BlockSpec((None, T, Ca), lambda b: (b, 0, 1)),
                  pl.BlockSpec((None, T, Ca), lambda b: (b, 0, 2))],
        out_specs=pl.BlockSpec((None, T, Ca), lambda b: (b, 0, 0)),
        compiler_params=pltpu.CompilerParams(
            dimension_semantics=("parallel",),
            vmem_limit_bytes=_VMEM_LIMIT),
        cost_estimate=pl.CostEstimate(
            flops=4 * B * H * T * T * hs_p,
            transcendentals=B * H * T * T,
            bytes_accessed=2 * (3 * B * T * Ca) + 2 * B * T * Ca),
    )(qkv, qkv, qkv)


# ---------------------------------------------------------------------------
# Parameters (unpadded "master" params + 128-aligned kernel params)
# ---------------------------------------------------------------------------

def init_params(key, n_embd, n_head):
    C, hs, Hid = n_embd, n_embd // n_head, 4 * n_embd
    ks = jax.random.split(key, 9)
    r = lambda k, s: 0.02 * jax.random.normal(k, s, jnp.float32)
    return {
        "n_head": n_head,
        "Wq": r(ks[0], (n_head, C, hs)),   # per-head (bias=False), matmul layout
        "Wk": r(ks[1], (n_head, C, hs)),
        "Wv": r(ks[2], (n_head, C, hs)),
        "Wo": r(ks[3], (C, C)), "bo": r(ks[4], (C,)),
        "W1": r(ks[5], (C, Hid)), "b1": r(ks[6], (Hid,)),
        "W2": r(ks[7], (Hid, C)), "b2": r(ks[8], (C,)),
        "g1": jnp.ones((C,), jnp.float32), "be1": jnp.zeros((C,), jnp.float32),
        "g2": jnp.ones((C,), jnp.float32), "be2": jnp.zeros((C,), jnp.float32),
    }


def pad_params(p):
    """Zero-pad all dims to 128 multiples (per-head for q/k/v/Wo-rows) for lane-dense tiling."""
    H = p["n_head"]
    C = p["Wo"].shape[0]
    hs = C // H
    Hid = p["W1"].shape[1]
    hs_p = _round_up(hs, 128)
    Ce = _round_up(C, 128)          # padded embedding width (residual / LN layout)
    Ca = H * hs_p                   # padded head-concat width
    Hp = _round_up(Hid, 128)        # padded FFN hidden width
    bf = jnp.bfloat16

    def pad2(a, r, c):
        return _pad_to(a, (r, c))

    def head_cat(W):                # W: (H, C, hs) -> (Ce, H*hs_p)
        return jnp.concatenate([pad2(W[h], Ce, hs_p) for h in range(H)], axis=1)

    Wqkv = jnp.concatenate([head_cat(p["Wq"]), head_cat(p["Wk"]), head_cat(p["Wv"])], axis=1)
    Wo = jnp.concatenate([pad2(p["Wo"][h * hs:(h + 1) * hs, :], hs_p, Ce)
                          for h in range(H)], axis=0)

    def vec(v, n):
        return _pad_to(v.reshape(1, -1), (1, n)).astype(jnp.float32)

    return {
        "n_head": H, "C": C, "hs": hs, "hs_p": hs_p, "Ce": Ce, "Ca": Ca,
        "Wqkv": Wqkv.astype(bf),
        "Wo": Wo.astype(bf), "bo": vec(p["bo"], Ce),
        "W1": pad2(p["W1"], Ce, Hp).astype(bf), "b1": vec(p["b1"], Hp),
        "W2": pad2(p["W2"], Hp, Ce).astype(bf), "b2": vec(p["b2"], Ce),
        "g1": vec(p["g1"], Ce), "be1": vec(p["be1"], Ce),
        "g2": vec(p["g2"], Ce), "be2": vec(p["be2"], Ce),
    }


# ---------------------------------------------------------------------------
# Block forward
# ---------------------------------------------------------------------------

def block_forward(kp, x):
    """PyTorch Block.forward (eval mode): x -> LN2(x' + FFN(x')), x' = LN1(x + MHA(x))."""
    B, T, C = x.shape
    H, hs, hs_p = kp["n_head"], kp["hs"], kp["hs_p"]
    Ce, Ca = kp["Ce"], kp["Ca"]
    M = B * T

    x2 = _pad_to(x.reshape(M, C).astype(jnp.bfloat16), (M, Ce))   # padded lanes = 0

    # --- multi-head self-attention ---
    qkv = matmul(x2, kp["Wqkv"]).reshape(B, T, 3 * Ca)             # fused q|k|v projection
    attn = attention(qkv, B, T, H, hs, hs_p).reshape(M, Ca)        # heads concatenated
    x2 = linear_add_layernorm(attn, kp["Wo"], kp["bo"],            # proj + residual +
                              x2, kp["g1"], kp["be1"],             # LayerNorm1 (fused)
                              n_valid=kp["C"])

    # --- feed forward (fully fused: W1 + ReLU + W2 + residual + LayerNorm2) ---
    x2 = ffn_add_layernorm(x2, kp["W1"], kp["b1"], kp["W2"], kp["b2"],
                           x2, kp["g2"], kp["be2"], n_valid=kp["C"])

    return x2[:, :C].reshape(B, T, C).astype(x.dtype)


# ---------------------------------------------------------------------------
# Pure-JAX reference (mirrors the PyTorch module, f32 math, bf16-rounded weights)
# ---------------------------------------------------------------------------

def _ref_ln(z, g, b, eps=1e-5):
    mu = jnp.mean(z, axis=-1, keepdims=True)
    var = jnp.mean((z - mu) ** 2, axis=-1, keepdims=True)
    return (z - mu) * jax.lax.rsqrt(var + eps) * g + b


def _ref_block_forward(p, x):
    H = p["n_head"]
    B, T, C = x.shape
    hs = p["Wq"].shape[-1]
    f32 = jnp.float32
    w = lambda a: a.astype(jnp.bfloat16).astype(f32)
    xb = x.astype(jnp.bfloat16).astype(f32)
    x2 = xb.reshape(B * T, C)

    mask = jnp.tril(jnp.ones((T, T), dtype=bool))
    heads = []
    for h in range(H):
        q = xb @ w(p["Wq"][h]); k = xb @ w(p["Wk"][h]); v = xb @ w(p["Wv"][h])
        s = (q @ jnp.swapaxes(k, -1, -2)) * (hs ** -0.5)
        s = jnp.where(mask, s, -jnp.inf)
        heads.append(jax.nn.softmax(s, axis=-1) @ v)
    attn = jnp.concatenate(heads, axis=-1).reshape(B * T, C)

    y = attn @ w(p["Wo"]) + p["bo"]
    x2 = _ref_ln(x2 + y, p["g1"], p["be1"])
    h1 = jnp.maximum(x2 @ w(p["W1"]) + p["b1"], 0.0)
    y = h1 @ w(p["W2"]) + p["b2"]
    x2 = _ref_ln(x2 + y, p["g2"], p["be2"])
    return x2.reshape(B, T, C)


# ---------------------------------------------------------------------------

if __name__ == "__main__":
    # Small shapes consistent with the module (real config: n_embd=2000, n_head=8,
    # block_size=128).  head_size = 96 deliberately exercises the 128-lane padding path.
    N_EMBD, N_HEAD = 192, 2
    B, T = 2, 16

    key = jax.random.PRNGKey(0)
    pkey, xkey = jax.random.split(key)
    params = init_params(pkey, N_EMBD, N_HEAD)
    x = jax.random.normal(xkey, (B, T, N_EMBD), dtype=jnp.float32)

    kparams = pad_params(params)
    out = jax.block_until_ready(block_forward(kparams, x))

    assert out.shape == (B, T, N_EMBD), out.shape
    out_f32 = out.astype(jnp.float32)
    assert bool(jnp.all(jnp.isfinite(out_f32)))

    ref = _ref_block_forward(params, x)
    err = float(jnp.max(jnp.abs(out_f32 - ref)))
    assert err < 0.15, f"max abs error vs reference: {err}"

    print("KERNEL_OK")
</pallas_src>

<mosaic_0001>
module attributes {stable_mosaic.version = 11 : i64} {
  func.func @_matmul_kernel(%arg0: i32, %arg1: i32, %arg2: i32, %arg3: memref<16x256xbf16, #tpu.memory_space<vmem>>, %arg4: memref<256x256xbf16, #tpu.memory_space<vmem>>, %arg5: memref<16x256xbf16, #tpu.memory_space<vmem>>, %arg6: memref<16x256xf32, #tpu.memory_space<vmem>>) attributes {dimension_semantics = [#tpu.dimension_semantics<parallel>, #tpu.dimension_semantics<parallel>, #tpu.dimension_semantics<arbitrary>], iteration_bounds = array<i64: 2, 3, 1>, scalar_prefetch = 0 : i64, scratch_operands = 1 : i64, tpu.core_type = #tpu.core_type<tc>, window_params = [{transform_indices = @transform_0, window_bounds = array<i64: 16, 256>}, {transform_indices = @transform_1, window_bounds = array<i64: 256, 256>}, {transform_indices = @transform_2, window_bounds = array<i64: 16, 256>}]} {
    %c0_i32 = arith.constant 0 : i32
    %0 = arith.cmpi eq, %arg2, %c0_i32 : i32
    %1 = arith.extui %0 : i1 to i32
    %c0_i32_0 = arith.constant 0 : i32
    %2 = arith.cmpi ne, %1, %c0_i32_0 : i32
    scf.if %2 {
      %cst_10 = arith.constant 0.000000e+00 : f32
      %12 = vector.broadcast %cst_10 : f32 to vector<16x256xf32>
      %c0_11 = arith.constant 0 : index
      %c0_12 = arith.constant 0 : index
      %13 = vector.load %arg6[%c0_11, %c0_12] : memref<16x256xf32, #tpu.memory_space<vmem>>, vector<16x256xf32>
      tpu.vector_store %arg6[%c0_11, %c0_12], %12 {strides = array<i32>} : memref<16x256xf32, #tpu.memory_space<vmem>>, vector<16x256xf32>,
    } else {
    }
    %c0 = arith.constant 0 : index
    %c0_1 = arith.constant 0 : index
    %3 = vector.load %arg6[%c0, %c0_1] : memref<16x256xf32, #tpu.memory_space<vmem>>, vector<16x256xf32>
    %c0_2 = arith.constant 0 : index
    %c0_3 = arith.constant 0 : index
    %4 = vector.load %arg3[%c0_2, %c0_3] : memref<16x256xbf16, #tpu.memory_space<vmem>>, vector<16x256xbf16>
    %c0_4 = arith.constant 0 : index
    %c0_5 = arith.constant 0 : index
    %5 = vector.load %arg4[%c0_4, %c0_5] : memref<256x256xbf16, #tpu.memory_space<vmem>>, vector<256x256xbf16>
    %cst = arith.constant dense<0.000000e+00> : vector<16x256xf32>
    %6 = tpu.matmul %4, %5, %cst {dimension_numbers = #tpu.dot_dimension_numbers<[1], [0], [0], [1], [0, 0, 1, 1], [], []>} : vector<16x256xbf16>, vector<256x256xbf16>, vector<16x256xf32> -> vector<16x256xf32>
    %7 = arith.addf %3, %6 : vector<16x256xf32>
    %c0_6 = arith.constant 0 : index
    %c0_7 = arith.constant 0 : index
    %8 = vector.load %arg6[%c0_6, %c0_7] : memref<16x256xf32, #tpu.memory_space<vmem>>, vector<16x256xf32>
    tpu.vector_store %arg6[%c0_6, %c0_7], %7 {strides = array<i32>} : memref<16x256xf32, #tpu.memory_space<vmem>>, vector<16x256xf32>,
    %c0_i32_8 = arith.constant 0 : i32
    %9 = arith.cmpi eq, %arg2, %c0_i32_8 : i32
    %10 = arith.extui %9 : i1 to i32
    %c0_i32_9 = arith.constant 0 : i32
    %11 = arith.cmpi ne, %10, %c0_i32_9 : i32
    scf.if %11 {
      %c0_10 = arith.constant 0 : index
      %c0_11 = arith.constant 0 : index
      %12 = vector.load %arg6[%c0_10, %c0_11] : memref<16x256xf32, #tpu.memory_space<vmem>>, vector<16x256xf32>
      %13 = arith.truncf %12 : vector<16x256xf32> to vector<16x256xbf16>
      %c0_12 = arith.constant 0 : index
      %c0_13 = arith.constant 0 : index
      %14 = vector.load %arg5[%c0_12, %c0_13] : memref<16x256xbf16, #tpu.memory_space<vmem>>, vector<16x256xbf16>
      tpu.vector_store %arg5[%c0_12, %c0_13], %13 {strides = array<i32>} : memref<16x256xbf16, #tpu.memory_space<vmem>>, vector<16x256xbf16>,
    } else {
    }
    return
  }
  func.func @transform_0(%arg0: i32, %arg1: i32, %arg2: i32) -> (i32, i32) {
    %c0_i32 = arith.constant 0 : i32
    return %arg0, %arg2 : i32, i32
  }
  func.func @transform_1(%arg0: i32, %arg1: i32, %arg2: i32) -> (i32, i32) {
    %c0_i32 = arith.constant 0 : i32
    return %arg2, %arg1 : i32, i32
  }
  func.func @transform_2(%arg0: i32, %arg1: i32, %arg2: i32) -> (i32, i32) {
    %c0_i32 = arith.constant 0 : i32
    return %arg0, %arg1 : i32, i32
  }
}

</mosaic_0001>

<llo_original>
// kernel: tpu_custom_call.1
$region0: #{tpu_custom_call.1}
  #allocation0 [shape = 'u32[]', space=smem, size = 0x4, offset = 0x4, fixed_abs, tag = 'smem constant byte address 0x4 - core index']
  #allocation1 [shape = 'u32[144,128]{1,0:T(1,128)}', space=vmem, size = 0x12000, scoped, tag = 'internal scratch']
  #allocation2 [shape = 'f32[16,256]{1,0:T(8,128)}', space=vmem, size = 0x4000, scoped, tag = 'scratch operand']
  %s0 = inlined_call_operand.hbm [shape: bf16[32,256], index: 0, kind: input, shape index: {}]
  %s1 = inlined_call_operand.hbm [shape: bf16[256,768], index: 1, kind: input, shape index: {}]
  %s2 = inlined_call_operand.hbm [shape: bf16[32,768], index: 2, kind: output, shape index: {}]
  %s3 = sld [smem:[#allocation0]]
  $region57: #{tpu_custom_call.1} parent=0
    _
  %s5 = ssub.s32 1, %s3
  %s6 = scalar_select 0, %s5, %s3
  $region1: #{tpu_custom_call.1} parent=0
    #allocation3 [shape = 'u8[16384]{0}', space=vmem, size = 0x4000, scoped, tag = 'input window, operand 0']
    #allocation4 [shape = 's32[2]{0}', space=sflag, size = 0x8, scoped, tag = 'scoped memory for tpu_custom_call.1']
    #allocation5 [shape = 's32[2]{0}', space=sflag, size = 0x8, scoped, tag = 'scoped memory for tpu_custom_call.1']
    #allocation6 [shape = 'u8[262144]{0}', space=vmem, size = 0x40000, scoped, tag = 'input window, operand 1']
    #allocation7 [shape = 's32[2]{0}', space=sflag, size = 0x8, scoped, tag = 'scoped memory for tpu_custom_call.1']
    #allocation8 [shape = 'u8[16384]{0}', space=vmem, size = 0x4000, scoped, tag = 'output window, operand 0']
    %7 = vsyncpa [#allocation4], 0
    %s8 = scalar_lea.sflag [#allocation4], 1
    %9 = vsyncpa %s8, 0
    %10 = vsyncpa [#allocation7], 0
    %s11 = scalar_lea.sflag [#allocation7], 1
    %12 = vsyncpa %s11, 0
    %13 = vsyncpa [#allocation5], 0
    %s14 = scalar_lea.sflag [#allocation5], 1
    %15 = vsyncpa %s14, 0
    loop: start=0, step=1, limit=8
    $region2: #{tpu_custom_call.1} parent=1 // loop_pre_header
      _
    $region3: #{tpu_custom_call.1} parent=1 // loop_header
      %s17 = sphi 0, %s21
      %p18 = scmp.ge.s32.totalorder %s17, 8
      %s24 = sphi 0, %s43
      %s25 = sphi 0, %s39
      %s26 = sphi 0, %s35
      %s27 = sphi 0, %s24
      %s28 = sphi 0, %s25
      %s29 = sphi 0, %s26
      %s30 = sphi 0, %s27
      %s31 = sphi 0, %s28
      %s32 = sphi 0, %s29
      %s48 = sphi 0, %s50
      %s51 = sphi 0, %s48
      %s52 = sphi 0, %s51
      %s68 = sphi 0, %s52
      %s76 = sphi 0, %s78
      %s79 = sphi 0, %s76
      %s80 = sphi 0, %s79
      %s96 = sphi 0, %s80
      %s104 = sphi 0, %s106
      %s107 = sphi 0, %s104
      %s108 = sphi 0, %s107
      %s124 = sphi 0, %s108
    $region4: #{tpu_custom_call.1} parent=1 // loop_header_branch
      %20 = sbr.rel (%p18) target = $region8
    $region5: #{tpu_custom_call.1} parent=1 // loop_body
      %s22 = ssub.s32 %s17, 1
      %s23 = ssub.s32 %s17, 2
      %s33 = sadd.s32 1, %s26
      %p34 = scmp.ge.s32.totalorder %s33, 1
      %s35 = scalar_select %p34, 0, %s33
      %s36 = sadd.s32 1, %s25
      %s37 = scalar_select %p34, %s36, %s25
      %p38 = scmp.ge.s32.totalorder %s37, 3
      %s39 = scalar_select %p38, 0, %s37
      %s40 = sadd.s32 1, %s24
      %s41 = scalar_select %p38, %s40, %s24
      %p42 = scmp.ge.s32.totalorder %s41, 2
      %s43 = scalar_select %p42, 0, %s41
      %s44 = ssub.s32 %s24, %s43
      %s45 = ssub.s32 %s26, %s35
      %s46 = sor.u32 %s44, %s45
      %p47 = scmp.eq.s32.totalorder %s46, 0
      %s49 = sadd.s32 %s48, 1
      %s50 = scalar_select %p47, %s48, %s49
      %p53 = pneg %p47
      %p54 = scmp.eq.s32.totalorder %s17, 5
      %p55 = por %p53, %p54
      %p56 = scmp.ne.s32.totalorder %s48, %s51
      %p57 = scmp.eq.s32.totalorder %s17, 0
      %p58 = por %p56, %p57
      %p59 = scmp.ne.s32.totalorder %s48, %s51
      %p60 = scmp.eq.s32.totalorder %s22, 5
      %p61 = por %p59, %p60
      %p62 = scmp.ne.s32.totalorder %s51, %s52
      %p63 = scmp.eq.s32.totalorder %s22, 0
      %p64 = por %p62, %p63
      %p65 = scmp.ne.s32.totalorder %s51, %s52
      %p66 = scmp.eq.s32.totalorder %s23, 5
      %p67 = por %p65, %p66
      %p69 = scmp.ne.s32.totalorder %s52, %s68
      %p70 = scmp.eq.s32.totalorder %s23, 0
      %p71 = por %p69, %p70
      %s72 = ssub.s32 %s26, %s35
      %s73 = ssub.s32 %s25, %s39
      %s74 = sor.u32 %s72, %s73
      %p75 = scmp.eq.s32.totalorder %s74, 0
      %s77 = sadd.s32 %s76, 1
      %s78 = scalar_select %p75, %s76, %s77
      %p81 = pneg %p75
      %p82 = scmp.eq.s32.totalorder %s17, 5
      %p83 = por %p81, %p82
      %p84 = scmp.ne.s32.totalorder %s76, %s79
      %p85 = scmp.eq.s32.totalorder %s17, 0
      %p86 = por %p84, %p85
      %p87 = scmp.ne.s32.totalorder %s76, %s79
      %p88 = scmp.eq.s32.totalorder %s22, 5
      %p89 = por %p87, %p88
      %p90 = scmp.ne.s32.totalorder %s79, %s80
      %p91 = scmp.eq.s32.totalorder %s22, 0
      %p92 = por %p90, %p91
      %p93 = scmp.ne.s32.totalorder %s79, %s80
      %p94 = scmp.eq.s32.totalorder %s23, 5
      %p95 = por %p93, %p94
      %p97 = scmp.ne.s32.totalorder %s80, %s96
      %p98 = scmp.eq.s32.totalorder %s23, 0
      %p99 = por %p97, %p98
      %s100 = ssub.s32 %s24, %s43
      %s101 = ssub.s32 %s25, %s39
      %s102 = sor.u32 %s100, %s101
      %p103 = scmp.eq.s32.totalorder %s102, 0
      %s105 = sadd.s32 %s104, 1
      %s106 = scalar_select %p103, %s104, %s105
      %p109 = pneg %p103
      %p110 = scmp.eq.s32.totalorder %s17, 5
      %p111 = por %p109, %p110
      %p112 = scmp.ne.s32.totalorder %s104, %s107
      %p113 = scmp.eq.s32.totalorder %s17, 0
      %p114 = por %p112, %p113
      %p115 = scmp.ne.s32.totalorder %s104, %s107
      %p116 = scmp.eq.s32.totalorder %s22, 5
      %p117 = por %p115, %p116
      %p118 = scmp.ne.s32.totalorder %s107, %s108
      %p119 = scmp.eq.s32.totalorder %s22, 0
      %p120 = por %p118, %p119
      %p121 = scmp.ne.s32.totalorder %s107, %s108
      %p122 = scmp.eq.s32.totalorder %s23, 5
      %p123 = por %p121, %p122
      %p125 = scmp.ne.s32.totalorder %s108, %s124
      %p126 = scmp.eq.s32.totalorder %s23, 0
      %p127 = por %p125, %p126
      %p128 = scmp.le.s32.totalorder 1, %s17
      %p129 = scmp.lt.s32.totalorder %s17, 7
      %p130 = pnand %p128, %p129
      %p131 = pneg %p130
      // Predicated region
      $region9: #{tpu_custom_call.1} parent=5 // pred_check
        _
      $region10: #{tpu_custom_call.1} parent=5 // pred_check_branch
        %133 = sbr.rel (%p130) target = $region12
      $region11: #{tpu_custom_call.1} parent=5 // pred_region
        %s134 = ssub.s32 %s17, 1
      $region12: #{tpu_custom_call.1} parent=5 // pred_fallthru
        _
      %p135 = scmp.lt.s32.totalorder %s17, 6
      // Predicated region
      $region13: #{tpu_custom_call.1} parent=5 // pred_check
        %p136 = pneg %p135
      $region14: #{tpu_custom_call.1} parent=5 // pred_check_branch
        %138 = sbr.rel (%p136) target = $region16
      $region15: #{tpu_custom_call.1} parent=5 // pred_region
        // Predicated region
        $region17: #{tpu_custom_call.1} parent=15 // pred_check
          %p139 = pneg %p58
        $region18: #{tpu_custom_call.1} parent=15 // pred_check_branch
          %141 = sbr.rel (%p139) target = $region20
        $region19: #{tpu_custom_call.1} parent=15 // pred_region
          %s142 = sand.u32 %s48, 1
          %s143 = scalar_lea.sflag [#allocation4], %s142
          %s144 = sand.u32 %s48, 1
          %s145 = smul.addr %s144, 16
          %s146 = scalar_lea.vmem [#allocation3], %s145
          %s147 = smul.u32 2, %s24
          %s148 = smul.u32 2, %s26
          %s150 = ssub.s32 256, 256
          %151 = vsyncadd %s143, %s150
          %s152 = smul.addr %s147, 2
          %s153 = sadd.s32 %s148, %s152
          %s154 = smul.addr %s153, 64
          %s155 = scalar_lea.hbm %s0, %s154
          %s156 = sshll.u32 %s146, 4
          %s157 = int_to_ptr.vmem [resolvable:$true] %s156
          %162 = dma.hbm_to_vmem [thread:$0]  %s155, 256, %s157, %s143, 128, 128, 8
        $region20: #{tpu_custom_call.1} parent=15 // pred_fallthru
          _
        // Predicated region
        $region21: #{tpu_custom_call.1} parent=15 // pred_check
          %p163 = pneg %p86
        $region22: #{tpu_custom_call.1} parent=15 // pred_check_branch
          %165 = sbr.rel (%p163) target = $region24
        $region23: #{tpu_custom_call.1} parent=15 // pred_region
          %s166 = sand.u32 %s76, 1
          %s167 = scalar_lea.sflag [#allocation7], %s166
          %s168 = sand.u32 %s76, 1
          %s169 = smul.addr %s168, 256
          %s170 = scalar_lea.vmem [#allocation6], %s169
          %s171 = smul.u32 32, %s26
          %s172 = smul.u32 2, %s25
          %s174 = ssub.s32 4096, 4096
          %175 = vsyncadd %s167, %s174
          %s176 = smul.addr %s171, 6
          %s177 = sadd.s32 %s172, %s176
          %s178 = smul.addr %s177, 64
          %s179 = scalar_lea.hbm %s1, %s178
          %s180 = sshll.u32 %s170, 4
          %s181 = int_to_ptr.vmem [resolvable:$true] %s180
          %186 = dma.hbm_to_vmem [thread:$0]  %s179, 4096, %s181, %s167, 384, 128, 8
        $region24: #{tpu_custom_call.1} parent=15 // pred_fallthru
          _
      $region16: #{tpu_custom_call.1} parent=5 // pred_fallthru
        _
      %p187 = scmp.le.s32.totalorder 1, %s17
      %p188 = scmp.lt.s32.totalorder %s17, 7
      %p189 = pnand %p187, %p188
      %p190 = pneg %p189
      // Predicated region
      $region25: #{tpu_custom_call.1} parent=5 // pred_check
        _
      $region26: #{tpu_custom_call.1} parent=5 // pred_check_branch
        %192 = sbr.rel (%p189) target = $region28
      $region27: #{tpu_custom_call.1} parent=5 // pred_region
        %s193 = ssub.s32 %s17, 1
        %s194 = sand.u32 %s51, 1
        %s195 = scalar_lea.sflag [#allocation4], %s194
        %s196 = sand.u32 %s51, 1
        %s197 = smul.addr %s196, 16
        %s198 = scalar_lea.vmem [#allocation3], %s197
        // Predicated region
        $region29: #{tpu_custom_call.1} parent=27 // pred_check
          %p199 = pneg %p64
        $region30: #{tpu_custom_call.1} parent=27 // pred_check_branch
          %201 = sbr.rel (%p199) target = $region32
        $region31: #{tpu_custom_call.1} parent=27 // pred_region
          %202 = dma.done %s195, 256
        $region32: #{tpu_custom_call.1} parent=27 // pred_fallthru
          _
        %s203 = sand.u32 %s79, 1
        %s204 = scalar_lea.sflag [#allocation7], %s203
        %s205 = sand.u32 %s79, 1
        %s206 = smul.addr %s205, 256
        %s207 = scalar_lea.vmem [#allocation6], %s206
        // Predicated region
        $region33: #{tpu_custom_call.1} parent=27 // pred_check
          %p208 = pneg %p92
        $region34: #{tpu_custom_call.1} parent=27 // pred_check_branch
          %210 = sbr.rel (%p208) target = $region36
        $region35: #{tpu_custom_call.1} parent=27 // pred_region
          %211 = dma.done %s204, 4096
        $region36: #{tpu_custom_call.1} parent=27 // pred_fallthru
          _
        %s212 = sand.u32 %s51, 1
        %s213 = scalar_lea.sflag [#allocation4], %s212
        %s214 = sand.u32 %s51, 1
        %s215 = smul.addr %s214, 16
        %s216 = scalar_lea.vmem [#allocation3], %s215
        %p217 = pneg %p64
        %p218 = pneg %p61
        %s219 = sand.u32 %s79, 1
        %s220 = scalar_lea.sflag [#allocation7], %s219
        %s221 = sand.u32 %s79, 1
        %s222 = smul.addr %s221, 256
        %s223 = scalar_lea.vmem [#allocation6], %s222
        %p224 = pneg %p92
        %p225 = pneg %p89
        %p226 = pneg %p120
        %p227 = pneg %p117
        %s228 = sand.u32 %s107, 1
        %s229 = scalar_lea.sflag [#allocation5], %s228
        %s230 = sand.u32 %s107, 1
        %s231 = smul.addr %s230, 16
        %s232 = scalar_lea.vmem [#allocation8], %s231
        %s233 = smul.u32 2, %s27
        %s234 = smul.u32 2, %s29
        %s235 = smul.u32 32, %s29
        %s236 = smul.u32 2, %s28
        %s237 = smul.u32 2, %s27
        %s238 = smul.u32 2, %s28
        %p239 = scmp.eq.s32.totalorder %s29, 0
        // Predicated region
        $region37: #{tpu_custom_call.1} parent=27 // pred_check
          %p240 = pneg %p239
        $region38: #{tpu_custom_call.1} parent=27 // pred_check_branch
          %242 = sbr.rel (%p240) target = $region40
        $region39: #{tpu_custom_call.1} parent=27 // pred_region
          %243 = vst [vmem:[#allocation2] sm:$0xff] 0.0
          %244 = vst [vmem:[#allocation2 + $0x8] sm:$0xff] 0.0
          %245 = vst [vmem:[#allocation2 + $0x10] sm:$0xff] 0.0
          %246 = vst [vmem:[#allocation2 + $0x18] sm:$0xff] 0.0
        $region40: #{tpu_custom_call.1} parent=27 // pred_fallthru
          _
        %v247 = vld [vmem:[#allocation2] sm:$0xff]
        %v248 = vld [vmem:[#allocation2 + $0x8] sm:$0xff]
        %v249 = vld [vmem:[#allocation2 + $0x10] sm:$0xff]
        %v250 = vld [vmem:[#allocation2 + $0x18] sm:$0xff]
        %v251 = vld [vmem:[%s198] sm:$0xff]
        %v252 = vld [vmem:[%s198 + $0x8] sm:$0xff]
        %v253 = vld [vmem:[%s207] sm:$0xff]
        %v254 = vld [vmem:[%s207 + $0x8] sm:$0xff]
        %v255 = vld [vmem:[%s207 + $0x10] sm:$0xff]
        %v256 = vld [vmem:[%s207 + $0x18] sm:$0xff]
        %v257 = vld [vmem:[%s207 + $0x20] sm:$0xff]
        %v258 = vld [vmem:[%s207 + $0x28] sm:$0xff]
        %v259 = vld [vmem:[%s207 + $0x30] sm:$0xff]
        %v260 = vld [vmem:[%s207 + $0x38] sm:$0xff]
        %v261 = vld [vmem:[%s207 + $0x40] sm:$0xff]
        %v262 = vld [vmem:[%s207 + $0x48] sm:$0xff]
        %v263 = vld [vmem:[%s207 + $0x50] sm:$0xff]
        %v264 = vld [vmem:[%s207 + $0x58] sm:$0xff]
        %v265 = vld [vmem:[%s207 + $0x60] sm:$0xff]
        %v266 = vld [vmem:[%s207 + $0x68] sm:$0xff]
        %v267 = vld [vmem:[%s207 + $0x70] sm:$0xff]
        %v268 = vld [vmem:[%s207 + $0x78] sm:$0xff]
        %v269 = vld [vmem:[%s207 + $0x80] sm:$0xff]
        %v270 = vld [vmem:[%s207 + $0x88] sm:$0xff]
        %v271 = vld [vmem:[%s207 + $0x90] sm:$0xff]
        %v272 = vld [vmem:[%s207 + $0x98] sm:$0xff]
        %v273 = vld [vmem:[%s207 + $0xa0] sm:$0xff]
        %v274 = vld [vmem:[%s207 + $0xa8] sm:$0xff]
        %v275 = vld [vmem:[%s207 + $0xb0] sm:$0xff]
        %v276 = vld [vmem:[%s207 + $0xb8] sm:$0xff]
        %v277 = vld [vmem:[%s207 + $0xc0] sm:$0xff]
        %v278 = vld [vmem:[%s207 + $0xc8] sm:$0xff]
        %v279 = vld [vmem:[%s207 + $0xd0] sm:$0xff]
        %v280 = vld [vmem:[%s207 + $0xd8] sm:$0xff]
        %v281 = vld [vmem:[%s207 + $0xe0] sm:$0xff]
        %v282 = vld [vmem:[%s207 + $0xe8] sm:$0xff]
        %v283 = vld [vmem:[%s207 + $0xf0] sm:$0xff]
        %v284 = vld [vmem:[%s207 + $0xf8] sm:$0xff]
        %v287 = vunpack.c.l.b16 %v251
        %v288 = vunpack.c.h.b16 %v251
        %v289 = vunpack.c.l.b16 %v252
        %v290 = vunpack.c.h.b16 %v252
        %v291 = vpack.c.b16 %v289, %v287
        %v292 = vpack.c.b16 %v290, %v288
        %v327 = vunpack.c.l.b16 %v253
        %v328 = vunpack.c.h.b16 %v253
        %v329 = vunpack.c.l.b16 %v254
        %v330 = vunpack.c.h.b16 %v254
        %v331 = vunpack.c.l.b16 %v255
        %v332 = vunpack.c.h.b16 %v255
        %v333 = vunpack.c.l.b16 %v256
        %v334 = vunpack.c.h.b16 %v256
        %v335 = vunpack.c.l.b16 %v257
        %v336 = vunpack.c.h.b16 %v257
        %v337 = vunpack.c.l.b16 %v258
        %v338 = vunpack.c.h.b16 %v258
        %v339 = vunpack.c.l.b16 %v259
        %v340 = vunpack.c.h.b16 %v259
        %v341 = vunpack.c.l.b16 %v260
        %v342 = vunpack.c.h.b16 %v260
        %v343 = vunpack.c.l.b16 %v261
        %v344 = vunpack.c.h.b16 %v261
        %v345 = vunpack.c.l.b16 %v262
        %v346 = vunpack.c.h.b16 %v262
        %v347 = vunpack.c.l.b16 %v263
        %v348 = vunpack.c.h.b16 %v263
        %v349 = vunpack.c.l.b16 %v264
        %v350 = vunpack.c.h.b16 %v264
        %v351 = vunpack.c.l.b16 %v265
        %v352 = vunpack.c.h.b16 %v265
        %v353 = vunpack.c.l.b16 %v266
        %v354 = vunpack.c.h.b16 %v266
        %v355 = vunpack.c.l.b16 %v267
        %v356 = vunpack.c.h.b16 %v267
        %v357 = vunpack.c.l.b16 %v268
        %v358 = vunpack.c.h.b16 %v268
        %v359 = vunpack.c.l.b16 %v269
        %v360 = vunpack.c.h.b16 %v269
        %v361 = vunpack.c.l.b16 %v270
        %v362 = vunpack.c.h.b16 %v270
        %v363 = vunpack.c.l.b16 %v271
        %v364 = vunpack.c.h.b16 %v271
        %v365 = vunpack.c.l.b16 %v272
        %v366 = vunpack.c.h.b16 %v272
        %v367 = vunpack.c.l.b16 %v273
        %v368 = vunpack.c.h.b16 %v273
        %v369 = vunpack.c.l.b16 %v274
        %v370 = vunpack.c.h.b16 %v274
        %v371 = vunpack.c.l.b16 %v275
        %v372 = vunpack.c.h.b16 %v275
        %v373 = vunpack.c.l.b16 %v276
        %v374 = vunpack.c.h.b16 %v276
        %v375 = vunpack.c.l.b16 %v277
        %v376 = vunpack.c.h.b16 %v277
        %v377 = vunpack.c.l.b16 %v278
        %v378 = vunpack.c.h.b16 %v278
        %v379 = vunpack.c.l.b16 %v279
        %v380 = vunpack.c.h.b16 %v279
        %v381 = vunpack.c.l.b16 %v280
        %v382 = vunpack.c.h.b16 %v280
        %v383 = vunpack.c.l.b16 %v281
        %v384 = vunpack.c.h.b16 %v281
        %v385 = vunpack.c.l.b16 %v282
        %v386 = vunpack.c.h.b16 %v282
        %v387 = vunpack.c.l.b16 %v283
        %v388 = vunpack.c.h.b16 %v283
        %v389 = vunpack.c.l.b16 %v284
        %v390 = vunpack.c.h.b16 %v284
        %v391 = vpack.c.b16 %v329, %v327
        %v392 = vpack.c.b16 %v330, %v328
        %v393 = vpack.c.b16 %v333, %v331
        %v394 = vpack.c.b16 %v334, %v332
        %v395 = vpack.c.b16 %v337, %v335
        %v396 = vpack.c.b16 %v338, %v336
        %v397 = vpack.c.b16 %v341, %v339
        %v398 = vpack.c.b16 %v342, %v340
        %v399 = vpack.c.b16 %v345, %v343
        %v400 = vpack.c.b16 %v346, %v344
        %v401 = vpack.c.b16 %v349, %v347
        %v402 = vpack.c.b16 %v350, %v348
        %v403 = vpack.c.b16 %v353, %v351
        %v404 = vpack.c.b16 %v354, %v352
        %v405 = vpack.c.b16 %v357, %v355
        %v406 = vpack.c.b16 %v358, %v356
        %v407 = vpack.c.b16 %v361, %v359
        %v408 = vpack.c.b16 %v362, %v360
        %v409 = vpack.c.b16 %v365, %v363
        %v410 = vpack.c.b16 %v366, %v364
        %v411 = vpack.c.b16 %v369, %v367
        %v412 = vpack.c.b16 %v370, %v368
        %v413 = vpack.c.b16 %v373, %v371
        %v414 = vpack.c.b16 %v374, %v372
        %v415 = vpack.c.b16 %v377, %v375
        %v416 = vpack.c.b16 %v378, %v376
        %v417 = vpack.c.b16 %v381, %v379
        %v418 = vpack.c.b16 %v382, %v380
        %v419 = vpack.c.b16 %v385, %v383
        %v420 = vpack.c.b16 %v386, %v384
        %v421 = vpack.c.b16 %v389, %v387
        %v422 = vpack.c.b16 %v390, %v388
        %455 = vmatprep.subr.bf16.mxu0 %v406
        %456 = vmatpush1.bf16.msra.mxu0 %v405
        %457 = vmatprep.subr.bf16.mxu0 %v404
        %458 = vmatpush1.bf16.msra.mxu0 %v403
        %459 = vmatprep.subr.bf16.mxu0 %v402
        %460 = vmatpush1.bf16.msra.mxu0 %v401
        %461 = vmatprep.subr.bf16.mxu0 %v400
        %462 = vmatpush1.bf16.msra.mxu0 %v399
        %463 = vmatprep.subr.bf16.mxu0 %v398
        %464 = vmatpush1.bf16.msra.mxu0 %v397
        %465 = vmatprep.subr.bf16.mxu0 %v396
        %466 = vmatpush1.bf16.msra.mxu0 %v395
        %467 = vmatprep.subr.bf16.mxu0 %v394
        %468 = vmatpush1.bf16.msra.mxu0 %v393
        %469 = vmatprep.subr.bf16.mxu0 %v392
        %470 = vmatpush1.bf16.msra.mxu0 %v391
        %471 = vmatprep.subr.bf16.mxu0 %v422
        %472 = vmatpush2.bf16.msra.mxu0 %v421
        %473 = vmatprep.subr.bf16.mxu0 %v420
        %474 = vmatpush2.bf16.msra.mxu0 %v419
        %475 = vmatprep.subr.bf16.mxu0 %v418
        %476 = vmatpush2.bf16.msra.mxu0 %v417
        %477 = vmatprep.subr.bf16.mxu0 %v416
        %478 = vmatpush2.bf16.msra.mxu0 %v415
        %479 = vmatprep.subr.bf16.mxu0 %v414
        %480 = vmatpush2.bf16.msra.mxu0 %v413
        %481 = vmatprep.subr.bf16.mxu0 %v412
        %482 = vmatpush2.bf16.msra.mxu0 %v411
        %483 = vmatprep.subr.bf16.mxu0 %v410
        %484 = vmatpush2.bf16.msra.mxu0 %v409
        %485 = vmatprep.subr.bf16.mxu0 %v408
        %486 = vmatpush2.bf16.msra.mxu0 %v407
        %487 = vmatprep.mubr.bf16.mxu0 %v292
        %488 = vmatmul.mubr.bf16.gmra.mxu0 %v291
        %v489 = vpop.f32.mrf.mxu0
        %v490 = vadd.f32 0.0, %v489
        %v491 = vpop.f32.mrf.mxu0
        %v492 = vadd.f32 0.0, %v491
        %v493 = vpop.f32.mrf.mxu0
        %v494 = vadd.f32 0.0, %v493
        %v495 = vpop.f32.mrf.mxu0
        %v496 = vadd.f32 0.0, %v495
        %497 = vdwg.mxu0
        %v498 = vadd.f32 %v247, %v490
        %v499 = vadd.f32 %v248, %v492
        %v500 = vadd.f32 %v249, %v494
        %v501 = vadd.f32 %v250, %v496
        %502 = vst [vmem:[#allocation2] sm:$0xff] %v498
        %503 = vst [vmem:[#allocation2 + $0x8] sm:$0xff] %v499
        %504 = vst [vmem:[#allocation2 + $0x10] sm:$0xff] %v500
        %505 = vst [vmem:[#allocation2 + $0x18] sm:$0xff] %v501
        // Predicated region
        $region41: #{tpu_custom_call.1} parent=27 // pred_check
          %p506 = pneg %p239
        $region42: #{tpu_custom_call.1} parent=27 // pred_check_branch
          %508 = sbr.rel (%p506) target = $region44
        $region43: #{tpu_custom_call.1} parent=27 // pred_region
          %v509 = vld [vmem:[#allocation2] sm:$0xff]
          %v510 = vld [vmem:[#allocation2 + $0x8] sm:$0xff]
          %v511 = vld [vmem:[#allocation2 + $0x10] sm:$0xff]
          %v512 = vld [vmem:[#allocation2 + $0x18] sm:$0xff]
          %v513 = vpack.c.bf16 %v511, %v509
          %v514 = vpack.c.bf16 %v512, %v510
          %v517 = vunpack.c.l.b16 %v513
          %v518 = vunpack.c.l.b16 %v514
          %v519 = vunpack.c.h.b16 %v513
          %v520 = vunpack.c.h.b16 %v514
          %v521 = vpack.c.b16 %v518, %v517
          %v522 = vpack.c.b16 %v520, %v519
          %525 = vst [vmem:[%s232] sm:$0xff] %v521
          %526 = vst [vmem:[%s232 + $0x8] sm:$0xff] %v522
        $region44: #{tpu_custom_call.1} parent=27 // pred_fallthru
          _
        %s527 = sand.u32 %s107, 1
        %s528 = scalar_lea.sflag [#allocation5], %s527
        %s529 = sand.u32 %s107, 1
        %s530 = smul.addr %s529, 16
        %s531 = scalar_lea.vmem [#allocation8], %s530
        // Predicated region
        $region45: #{tpu_custom_call.1} parent=27 // pred_check
          %p532 = pneg %p117
        $region46: #{tpu_custom_call.1} parent=27 // pred_check_branch
          %534 = sbr.rel (%p532) target = $region48
        $region47: #{tpu_custom_call.1} parent=27 // pred_region
          %s535 = smul.u32 2, %s27
          %s536 = smul.u32 2, %s28
          %s538 = ssub.s32 256, 256
          %539 = vsyncadd %s528, %s538
          %s540 = smul.addr %s535, 6
          %s541 = sadd.s32 %s536, %s540
          %s542 = smul.addr %s541, 64
          %s543 = scalar_lea.hbm %s2, %s542
          %s544 = sshll.u32 %s531, 4
          %s545 = int_to_ptr.vmem [resolvable:$true] %s544
          %550 = dma.vmem_to_hbm [thread:$0]  %s545, 256, %s543, %s528, 128, 384, 8
        $region48: #{tpu_custom_call.1} parent=27 // pred_fallthru
          _
      $region28: #{tpu_custom_call.1} parent=5 // pred_fallthru
        _
      %p551 = scmp.le.s32.totalorder 2, %s17
      // Predicated region
      $region49: #{tpu_custom_call.1} parent=5 // pred_check
        %p552 = pneg %p551
      $region50: #{tpu_custom_call.1} parent=5 // pred_check_branch
        %554 = sbr.rel (%p552) target = $region52
      $region51: #{tpu_custom_call.1} parent=5 // pred_region
        %s555 = ssub.s32 %s17, 2
        // Predicated region
        $region53: #{tpu_custom_call.1} parent=51 // pred_check
          %p556 = pneg %p123
        $region54: #{tpu_custom_call.1} parent=51 // pred_check_branch
          %558 = sbr.rel (%p556) target = $region56
        $region55: #{tpu_custom_call.1} parent=51 // pred_region
          %s559 = sand.u32 %s108, 1
          %s560 = scalar_lea.sflag [#allocation5], %s559
          %s561 = sand.u32 %s108, 1
          %s562 = smul.addr %s561, 16
          %s563 = scalar_lea.vmem [#allocation8], %s562
          %564 = dma.done %s560, 256
        $region56: #{tpu_custom_call.1} parent=51 // pred_fallthru
          _
      $region52: #{tpu_custom_call.1} parent=5 // pred_fallthru
        _
    $region6: #{tpu_custom_call.1} parent=1 // loop_footer
      %s21 = sadd.s32 1, %s17
    $region7: #{tpu_custom_call.1} parent=1 // loop_footer_branch
      %16 = sbr.rel target = $region3
    $region8: #{tpu_custom_call.1} parent=1 // loop_exit
      _
    %565 = vsyncpa [#allocation4], 1
    %s566 = scalar_lea.sflag [#allocation4], 1
    %567 = vsyncpa %s566, 1
    %568 = vsyncpa [#allocation7], 1
    %s569 = scalar_lea.sflag [#allocation7], 1
    %570 = vsyncpa %s569, 1
    %571 = vsyncpa [#allocation5], 1
    %s572 = scalar_lea.sflag [#allocation5], 1
    %573 = vsyncpa %s572, 1

</llo_original>
